<compile_context>
chip_gen: v6e
topology: v6e:2x2x1
jax: 0.10.0
libtpu: 0.0.40
codegen_flags: <defaults>
</compile_context>

<pallas_src>
import functools

import jax
import jax.numpy as jnp
from jax.experimental import pallas as pl
from jax.experimental.pallas import tpu as pltpu


def _round_up(v, m):
    return ((v + m - 1) // m) * m


# ----------------------------------------------------------------------------
# Kernel
# ----------------------------------------------------------------------------
def _ln_distance_kernel(x_ref, y_ref, o_ref, acc_ref, *, n):
    """Accumulate sum(|x - y|^n) over feature tiles; finalize with n-th root."""
    k = pl.program_id(1)

    @pl.when(k == 0)
    def _():
        acc_ref[...] = jnp.zeros_like(acc_ref)

    d = x_ref[...].astype(jnp.float32) - y_ref[...].astype(jnp.float32)
    if n == 1:
        p = jnp.abs(d)
    elif n == 2:
        p = d * d                      # |d|^2 without the abs
    else:
        p = jnp.abs(d) ** n

    nb, rows, lanes = p.shape
    # Pure-VPU partial accumulation: fold sublane-groups of 8 rows into an
    # (nb, 8, 128) accumulator. The cross-sublane/lane reduce is deferred
    # out of the hot loop (keeps XLU off the per-step critical path).
    acc_ref[...] += p.reshape(nb, rows // 8, 8, lanes).sum(axis=1)

    @pl.when(k == pl.num_programs(1) - 1)
    def _():
        s = jnp.sum(acc_ref[...], axis=1)          # (nb, 128)
        s = jnp.sum(s, axis=1, keepdims=True)      # (nb, 1)
        if n == 1:
            r = s
        elif n == 2:
            r = jnp.sqrt(s)
        else:
            r = s ** (1.0 / float(n))
        o_ref[...] = r.astype(o_ref.dtype)


# ----------------------------------------------------------------------------
# Wrapper
# ----------------------------------------------------------------------------
@functools.partial(jax.jit, static_argnames=("n",))
def ln_distance_forward(x, y, n=2):
    """x, y: (N, ...) arrays of identical shape. Returns (N,) float32."""
    batch = x.shape[0]
    feat = 1
    for s in x.shape[1:]:
        feat *= s

    x2 = x.reshape(batch, feat)
    y2 = y.reshape(batch, feat)

    # ---- tile selection ----------------------------------------------------
    # Batch block: leading dim of a 3-D block has no (8,128) constraint; the
    # (n_tile, 1) output block needs n_tile == full dim or a multiple of 8.
    n_tile = batch if batch <= 256 else 256
    batch_pad = _round_up(batch, n_tile)

    # Lane-dense feature layout: (batch, rows, 128); rows map to sublanes.
    rows = pl.cdiv(feat, 128)
    max_block_elems = 512 * 1024                    # 2 MiB f32 per input block
    rows_cap = max(8, (max_block_elems // (n_tile * 128)) // 8 * 8)
    rows_tile = min(_round_up(rows, 8), rows_cap)
    rows_pad = _round_up(rows, rows_tile)
    feat_pad = rows_pad * 128

    # ---- pad (zero padding contributes exactly 0 to the sum) ---------------
    if feat_pad != feat:
        x2 = jnp.pad(x2, ((0, 0), (0, feat_pad - feat)))
        y2 = jnp.pad(y2, ((0, 0), (0, feat_pad - feat)))
    if batch_pad != batch:
        x2 = jnp.pad(x2, ((0, batch_pad - batch), (0, 0)))
        y2 = jnp.pad(y2, ((0, batch_pad - batch), (0, 0)))

    x3 = x2.reshape(batch_pad, rows_pad, 128)
    y3 = y2.reshape(batch_pad, rows_pad, 128)

    grid = (batch_pad // n_tile, rows_pad // rows_tile)

    block_bytes = n_tile * rows_tile * 128 * 4
    # 2 inputs x 2 pipeline buffers + scratch/output + headroom; clamp to a
    # budget safe on v5e/v6e (128 MiB) and v7x (64 MiB per TC).
    vmem_limit = int(min(max(6 * block_bytes + (4 << 20), 16 << 20), 48 << 20))

    kernel = functools.partial(_ln_distance_kernel, n=n)

    out = pl.pallas_call(
        kernel,
        out_shape=jax.ShapeDtypeStruct((batch_pad, 1), jnp.float32),
        grid_spec=pltpu.PrefetchScalarGridSpec(
            num_scalar_prefetch=0,
            grid=grid,
            in_specs=[
                pl.BlockSpec((n_tile, rows_tile, 128), lambda i, k: (i, k, 0)),
                pl.BlockSpec((n_tile, rows_tile, 128), lambda i, k: (i, k, 0)),
            ],
            out_specs=pl.BlockSpec((n_tile, 1), lambda i, k: (i, 0)),
            scratch_shapes=[pltpu.VMEM((n_tile, 8, 128), jnp.float32)],
        ),
        compiler_params=pltpu.CompilerParams(
            dimension_semantics=("parallel", "arbitrary"),
            vmem_limit_bytes=vmem_limit,
        ),
    )(x3, y3)

    return out[:batch, 0]


# ----------------------------------------------------------------------------
# Reference (pure JAX) for sanity check.
# ----------------------------------------------------------------------------
def ln_distance_reference(x, y, n=2):
    d = jnp.abs(x - y) ** n
    s = jnp.sum(d, axis=tuple(range(1, d.ndim)))
    return s ** (1.0 / float(n))


if __name__ == "__main__":
    key = jax.random.PRNGKey(0)
    k_x, k_y = jax.random.split(key, 2)

    # Small NCHW shapes consistent with the module's usage.
    N, C, H, W = 2, 4, 16, 16
    x = jax.random.normal(k_x, (N, C, H, W), dtype=jnp.float32)
    y = jax.random.normal(k_y, (N, C, H, W), dtype=jnp.float32)

    out2 = ln_distance_forward(x, y, n=2)
    jax.block_until_ready(out2)
    ref2 = ln_distance_reference(x, y, n=2)
    assert out2.shape == (N,)
    assert jnp.allclose(out2, ref2, rtol=1e-5, atol=1e-4), (out2, ref2)

    out1 = ln_distance_forward(x, y, n=1)
    jax.block_until_ready(out1)
    ref1 = ln_distance_reference(x, y, n=1)
    assert out1.shape == (N,)
    assert jnp.allclose(out1, ref1, rtol=1e-5, atol=1e-4), (out1, ref1)

    print("KERNEL_OK")
</pallas_src>

<mosaic_0001>
module attributes {stable_mosaic.version = 11 : i64} {
  func.func @_ln_distance_kernel(%arg0: i32, %arg1: i32, %arg2: memref<2x8x128xf32, #tpu.memory_space<vmem>>, %arg3: memref<2x8x128xf32, #tpu.memory_space<vmem>>, %arg4: memref<2x1xf32, #tpu.memory_space<vmem>>, %arg5: memref<2x8x128xf32, #tpu.memory_space<vmem>>) attributes {dimension_semantics = [#tpu.dimension_semantics<parallel>, #tpu.dimension_semantics<arbitrary>], iteration_bounds = array<i64: 1, 1>, scalar_prefetch = 0 : i64, scratch_operands = 1 : i64, tpu.core_type = #tpu.core_type<tc>, window_params = [{transform_indices = @transform_0, window_bounds = array<i64: 2, 8, 128>}, {transform_indices = @transform_1, window_bounds = array<i64: 2, 8, 128>}, {transform_indices = @transform_2, window_bounds = array<i64: 2, 1>}]} {
    %c0_i32 = arith.constant 0 : i32
    %0 = arith.cmpi eq, %arg1, %c0_i32 : i32
    %1 = arith.extui %0 : i1 to i32
    %c0_i32_0 = arith.constant 0 : i32
    %2 = arith.cmpi ne, %1, %c0_i32_0 : i32
    scf.if %2 {
      %cst_14 = arith.constant 0.000000e+00 : f32
      %15 = vector.broadcast %cst_14 : f32 to vector<2x8x128xf32>
      %c0_15 = arith.constant 0 : index
      %c0_16 = arith.constant 0 : index
      %c0_17 = arith.constant 0 : index
      %16 = vector.load %arg5[%c0_15, %c0_16, %c0_17] : memref<2x8x128xf32, #tpu.memory_space<vmem>>, vector<2x8x128xf32>
      tpu.vector_store %arg5[%c0_15, %c0_16, %c0_17], %15 {strides = array<i32>} : memref<2x8x128xf32, #tpu.memory_space<vmem>>, vector<2x8x128xf32>,
    } else {
    }
    %c0 = arith.constant 0 : index
    %c0_1 = arith.constant 0 : index
    %c0_2 = arith.constant 0 : index
    %3 = vector.load %arg2[%c0, %c0_1, %c0_2] : memref<2x8x128xf32, #tpu.memory_space<vmem>>, vector<2x8x128xf32>
    %c0_3 = arith.constant 0 : index
    %c0_4 = arith.constant 0 : index
    %c0_5 = arith.constant 0 : index
    %4 = vector.load %arg3[%c0_3, %c0_4, %c0_5] : memref<2x8x128xf32, #tpu.memory_space<vmem>>, vector<2x8x128xf32>
    %5 = arith.subf %3, %4 : vector<2x8x128xf32>
    %6 = arith.mulf %5, %5 : vector<2x8x128xf32>
    %c0_6 = arith.constant 0 : index
    %c0_7 = arith.constant 0 : index
    %c0_8 = arith.constant 0 : index
    %7 = vector.load %arg5[%c0_6, %c0_7, %c0_8] : memref<2x8x128xf32, #tpu.memory_space<vmem>>, vector<2x8x128xf32>
    %8 = vector.shape_cast %6 : vector<2x8x128xf32> to vector<2x1x8x128xf32>
    %cst = arith.constant dense<0.000000e+00> : vector<2x8x128xf32>
    %9 = vector.multi_reduction <add>, %8, %cst [1] : vector<2x1x8x128xf32> to vector<2x8x128xf32>
    %10 = arith.addf %7, %9 : vector<2x8x128xf32>
    %c0_9 = arith.constant 0 : index
    %c0_10 = arith.constant 0 : index
    %c0_11 = arith.constant 0 : index
    %11 = vector.load %arg5[%c0_9, %c0_10, %c0_11] : memref<2x8x128xf32, #tpu.memory_space<vmem>>, vector<2x8x128xf32>
    tpu.vector_store %arg5[%c0_9, %c0_10, %c0_11], %10 {strides = array<i32>} : memref<2x8x128xf32, #tpu.memory_space<vmem>>, vector<2x8x128xf32>,
    %c0_i32_12 = arith.constant 0 : i32
    %12 = arith.cmpi eq, %arg1, %c0_i32_12 : i32
    %13 = arith.extui %12 : i1 to i32
    %c0_i32_13 = arith.constant 0 : i32
    %14 = arith.cmpi ne, %13, %c0_i32_13 : i32
    scf.if %14 {
      %c0_14 = arith.constant 0 : index
      %c0_15 = arith.constant 0 : index
      %c0_16 = arith.constant 0 : index
      %15 = vector.load %arg5[%c0_14, %c0_15, %c0_16] : memref<2x8x128xf32, #tpu.memory_space<vmem>>, vector<2x8x128xf32>
      %cst_17 = arith.constant dense<0.000000e+00> : vector<2x128xf32>
      %16 = vector.multi_reduction <add>, %15, %cst_17 [1] : vector<2x8x128xf32> to vector<2x128xf32>
      %cst_18 = arith.constant dense<0.000000e+00> : vector<2xf32>
      %17 = vector.multi_reduction <add>, %16, %cst_18 [1] : vector<2x128xf32> to vector<2xf32>
      %18 = vector.shape_cast %17 : vector<2xf32> to vector<2x1xf32>
      %19 = math.sqrt %18 : vector<2x1xf32>
      %c0_19 = arith.constant 0 : index
      %c0_20 = arith.constant 0 : index
      %20 = vector.load %arg4[%c0_19, %c0_20] : memref<2x1xf32, #tpu.memory_space<vmem>>, vector<2x1xf32>
      tpu.vector_store %arg4[%c0_19, %c0_20], %19 {strides = array<i32>} : memref<2x1xf32, #tpu.memory_space<vmem>>, vector<2x1xf32>,
    } else {
    }
    return
  }
  func.func @transform_0(%arg0: i32, %arg1: i32) -> (i32, i32, i32) {
    %c0_i32 = arith.constant 0 : i32
    %c0_i32_0 = arith.constant 0 : i32
    return %arg0, %arg1, %c0_i32 : i32, i32, i32
  }
  func.func @transform_1(%arg0: i32, %arg1: i32) -> (i32, i32, i32) {
    %c0_i32 = arith.constant 0 : i32
    %c0_i32_0 = arith.constant 0 : i32
    return %arg0, %arg1, %c0_i32 : i32, i32, i32
  }
  func.func @transform_2(%arg0: i32, %arg1: i32) -> (i32, i32) {
    %c0_i32 = arith.constant 0 : i32
    %c0_i32_0 = arith.constant 0 : i32
    return %arg0, %c0_i32 : i32, i32
  }
}

</mosaic_0001>

<llo_original>
// kernel: ln_distance_forward.1
$region0: #{ln_distance_forward.1}
  #allocation0 [shape = 'u32[]', space=smem, size = 0x4, offset = 0x4, fixed_abs, tag = 'smem constant byte address 0x4 - core index']
  #allocation1 [shape = 'u32[144,128]{1,0:T(1,128)}', space=vmem, size = 0x12000, scoped, tag = 'internal scratch']
  #allocation2 [shape = 'f32[2,8,128]{2,1,0:T(8,128)}', space=vmem, size = 0x2000, scoped, tag = 'scratch operand']
  %s0 = inlined_call_operand.vmem [shape: f32[2,8,128], index: 0, kind: input, shape index: {}]
  %s1 = inlined_call_operand.vmem [shape: f32[2,8,128], index: 1, kind: input, shape index: {}]
  %s2 = inlined_call_operand.vmem [shape: f32[2,1], index: 2, kind: output, shape index: {}]
  %s3 = sld [smem:[#allocation0]]
  $region26: #{ln_distance_forward.1} parent=0
    _
  %s5 = ssub.s32 1, %s3
  %s6 = scalar_select 0, %s5, %s3
  // Predicated region
  $region2: #{ln_distance_forward.1} parent=0 // pred_check
    _
  $region3: #{ln_distance_forward.1} parent=0 // pred_check_branch
    %8 = sbr.rel (0) target = $region5
  $region4: #{ln_distance_forward.1} parent=0 // pred_region
    _
  $region5: #{ln_distance_forward.1} parent=0 // pred_fallthru
    _
  // Predicated region
  $region6: #{ln_distance_forward.1} parent=0 // pred_check
    _
  $region7: #{ln_distance_forward.1} parent=0 // pred_check_branch
    %10 = sbr.rel (0) target = $region9
  $region8: #{ln_distance_forward.1} parent=0 // pred_region
    _
  $region9: #{ln_distance_forward.1} parent=0 // pred_fallthru
    _
  %p11 = scmp.eq.s32.totalorder 0, 0
  // Predicated region
  $region10: #{ln_distance_forward.1} parent=0 // pred_check
    %p12 = pneg %p11
  $region11: #{ln_distance_forward.1} parent=0 // pred_check_branch
    %14 = sbr.rel (%p12) target = $region13
  $region12: #{ln_distance_forward.1} parent=0 // pred_region
    %15 = vst [vmem:[#allocation2] sm:$0xff] 0.0
    %16 = vst [vmem:[#allocation2 + $0x8] sm:$0xff] 0.0
  $region13: #{ln_distance_forward.1} parent=0 // pred_fallthru
    _
  %v17 = vld [vmem:[%s0] sm:$0xff]
  %v18 = vld [vmem:[%s0 + $0x8] sm:$0xff]
  %v19 = vld [vmem:[%s1] sm:$0xff]
  %v20 = vld [vmem:[%s1 + $0x8] sm:$0xff]
  %v21 = vsub.f32 %v17, %v19
  %v22 = vsub.f32 %v18, %v20
  %v23 = vmul.f32 %v21, %v21
  %v24 = vmul.f32 %v22, %v22
  %v25 = vld [vmem:[#allocation2] sm:$0xff]
  %v26 = vld [vmem:[#allocation2 + $0x8] sm:$0xff]
  %v27 = vadd.f32 %v23, 0.0
  %v28 = vadd.f32 %v24, 0.0
  %v29 = vadd.f32 %v25, %v27
  %v30 = vadd.f32 %v26, %v28
  %31 = vst [vmem:[#allocation2] sm:$0xff] %v29
  %32 = vst [vmem:[#allocation2 + $0x8] sm:$0xff] %v30
  // Predicated region
  $region14: #{ln_distance_forward.1} parent=0 // pred_check
    %p33 = pneg %p11
  $region15: #{ln_distance_forward.1} parent=0 // pred_check_branch
    %35 = sbr.rel (%p33) target = $region17
  $region16: #{ln_distance_forward.1} parent=0 // pred_region
    %v36 = vld [vmem:[#allocation2] sm:$0xff]
    %v37 = vld [vmem:[#allocation2 + $0x8] sm:$0xff]
    %v38 = vrot.slane %v36, 4
    %v39 = vadd.f32 %v36, %v38
    %v40 = vrot.slane %v39, 2
    %v41 = vadd.f32 %v39, %v40
    %v42 = vrot.slane %v41, 1
    %v43 = vadd.f32 %v41, %v42
    %v44 = vrot.slane %v37, 4
    %v45 = vadd.f32 %v37, %v44
    %v46 = vrot.slane %v45, 2
    %v47 = vadd.f32 %v45, %v46
    %v48 = vrot.slane %v47, 1
    %v49 = vadd.f32 %v47, %v48
    %vm52 = vcmask 1041409
    %v53 = vsel %vm52, %v49, %v43
    %vm55 = vcmask 1041408
    %v56 = vsel %vm55, %v53, 0.0
    %57 = vadd.xlane.f32.xlu0 %v56
    %v58 = vpop.xlane.xlu0 %57
    %v59 = vrsqrt.pop %v58
    %v60 = vmul.f32 %v58, %v59
    %vm61 = vcmp.eq.f32.partialorder %v58, inf
    %v62 = vsel %vm61, %v58, %v60
    %vm63 = vcmp.eq.f32.partialorder %v58, 0.0
    %v64 = vand.u32 %v58, 2147483648
    %v65 = vsel %vm63, %v64, %v62
    %vm66 = vcmask 1024
    %67 = vst.msk [vmem:[%s2] sm:$0x3] %vm66, %v65
  $region17: #{ln_distance_forward.1} parent=0 // pred_fallthru
    _
  // Predicated region
  $region18: #{ln_distance_forward.1} parent=0 // pred_check
    _
  $region19: #{ln_distance_forward.1} parent=0 // pred_check_branch
    %69 = sbr.rel (0) target = $region21
  $region20: #{ln_distance_forward.1} parent=0 // pred_region
    _
  $region21: #{ln_distance_forward.1} parent=0 // pred_fallthru
    _
  // Predicated region
  $region22: #{ln_distance_forward.1} parent=0 // pred_check
    _
  $region23: #{ln_distance_forward.1} parent=0 // pred_check_branch
    %71 = sbr.rel (0) target = $region25
  $region24: #{ln_distance_forward.1} parent=0 // pred_region
    _
  $region25: #{ln_distance_forward.1} parent=0 // pred_fallthru
    _

</llo_original>
